<compile_context>
chip_gen: v7x
topology: tpu7x:2x2x1
jax: 0.10.0
libtpu: 0.0.40
codegen_flags: <defaults>
</compile_context>

<pallas_src>
import functools

import jax
import jax.numpy as jnp
from jax.experimental import pallas as pl
from jax.experimental.pallas import tpu as pltpu

EPS = 1e-5


def _round_up(x, m):
    return (x + m - 1) // m * m


def _pick_row_tile(H, W, cin_p, cout_p, w_bytes, budget=8 * 1024 * 1024):
    """Largest row-tile height th (a divisor of H) whose working set fits `budget`.

    The per-tile lane width L = th*W must be a multiple of 128 (lane-dense
    stripes for the intermediate and the NCHW output blocks) unless th == H,
    in which case L equals the full per-image spatial dim and is always legal.
    """
    best = H                                   # full-image fallback (always a legal block)
    for th in range(1, H + 1):
        if H % th:
            continue
        if th != H and (th * W) % 128:
            continue
        L = th * W
        lf = _round_up((th + 2) * W + 2, 128)
        need = (2 * cin_p * lf * 2             # double-buffered input slab (bf16)
                + 2 * cout_p * L * 2           # double-buffered conv-out stripe (bf16)
                + cout_p * L * 4               # f32 accumulator
                + 2 * w_bytes)                 # per-tap weights (constant index -> resident)
        if need <= budget:
            best = th
    return best


# ---- Pass 1: conv as 9 shifted MXU matmuls + per-tile partial BN statistics ----

def _conv_stats_kernel(x_ref, w_ref, m_ref, y_ref, stats_ref, *, width):
    # x_ref:     (1, Cin_p, Lf)     bf16  flattened (rows, W) slab, 1 zero prepended
    # w_ref:     (9, Cout_p, Cin_p) bf16  per-tap weights, tap k = ky*3 + kx
    # m_ref:     (3, L)             bf16  per-kx edge-column validity masks
    # y_ref:     (1, Cout_p, L)     bf16  conv output stripe (channels-major)
    # stats_ref: (1, Cout_p, 2)     f32   per-tile [sum, sum-of-squares]
    cout_p, L = y_ref.shape[1], y_ref.shape[2]
    acc = jnp.zeros((cout_p, L), jnp.float32)
    for ky in range(3):
        for kx in range(3):
            d = ky * width + kx                        # static lane offset of this tap
            xk = x_ref[0, :, d:d + L]                  # (Cin_p, L) bf16
            if kx != 1:                                # zero wrapped edge columns
                xk = xk * m_ref[kx, :]
            acc = acc + jnp.dot(w_ref[ky * 3 + kx], xk,
                                preferred_element_type=jnp.float32)
    y_ref[0, :, :] = acc.astype(y_ref.dtype)           # bf16 intermediate store
    stats_ref[0, :, 0:1] = jnp.sum(acc, axis=1, keepdims=True)        # f32 stats
    stats_ref[0, :, 1:2] = jnp.sum(acc * acc, axis=1, keepdims=True)


# ---- Pass 2: normalize + ReLU, written straight into NCHW-flat layout ----------

def _bn_relu_kernel(y_ref, ss_ref, o_ref):
    y = y_ref[0, :, :].astype(jnp.float32)              # (Cout_p, L)
    scale = ss_ref[:, 0:1]                               # (Cout_p, 1)
    shift = ss_ref[:, 1:2]
    o_ref[0, :, :] = jnp.maximum(y * scale + shift, 0.0)


def conv2d_bn_relu_forward(x_nchw, weight, bias, gamma, beta,
                           kernel_size=3, padding=1):
    """Conv2d(3x3, pad=1) + BatchNorm2d(training-mode stats) + ReLU, NCHW in/out."""
    assert kernel_size == 3 and padding == 1, "kernel specialized to 3x3 / pad=1"
    del bias  # A per-channel constant bias cancels exactly under training-mode BN.

    N, Cin, H, W = x_nchw.shape
    Cout = weight.shape[0]

    cin_p = _round_up(Cin, 8)
    cout_p = _round_up(Cout, 8)        # no blind pad to 128: blocks use full dims

    # Per-tap weights, channels-major: w_cm[ky*3+kx] = weight[:, :, ky, kx].
    w_cm = jnp.transpose(weight, (2, 3, 0, 1)).reshape(9, Cout, Cin)
    w_cm = jnp.pad(w_cm, ((0, 0), (0, cout_p - Cout), (0, cin_p - Cin)))
    w_cm = w_cm.astype(jnp.bfloat16)

    th = _pick_row_tile(H, W, cin_p, cout_p, w_bytes=w_cm.size * 2)
    T = H // th                         # row tiles per image
    L = th * W                          # lane width of one output stripe
    NT = N * T
    Lf = _round_up((th + 2) * W + 2, 128)
    M = N * H * W

    # Input glue (Cin-scaled, ~1 pass over x): keep NCHW, pad H by 1, gather
    # overlapping (th+2)-row slabs, flatten (rows, W), prepend one zero so every
    # tap offset d = ky*W + kx is a non-negative static lane slice.
    xp = jnp.pad(x_nchw.astype(jnp.bfloat16),
                 ((0, 0), (0, cin_p - Cin), (1, 1), (0, 0)))
    slabs = jnp.stack([xp[:, :, t * th: t * th + th + 2, :] for t in range(T)],
                      axis=1)                                   # (N,T,cin_p,th+2,W)
    slabs = slabs.reshape(NT, cin_p, (th + 2) * W)
    slabs = jnp.pad(slabs, ((0, 0), (0, 0), (1, Lf - (th + 2) * W - 1)))

    # Edge masks: kx=0 tap is invalid at output col 0, kx=2 at output col W-1.
    col = jnp.arange(L, dtype=jnp.int32) % W
    masks = jnp.stack([col != 0, jnp.ones((L,), jnp.bool_), col != W - 1], axis=0)
    masks = masks.astype(jnp.bfloat16)

    cparams = pltpu.CompilerParams(
        dimension_semantics=("parallel",),
        vmem_limit_bytes=40 * 1024 * 1024,       # headroom on v7x's 64 MiB VMEM
    )

    cost1 = pl.CostEstimate(
        flops=2 * 9 * NT * cout_p * cin_p * L,
        transcendentals=0,
        bytes_accessed=(slabs.size * 2 + w_cm.size * 2 + masks.size * 2
                        + NT * cout_p * L * 2 + NT * cout_p * 2 * 4),
    )

    y, stats = pl.pallas_call(
        functools.partial(_conv_stats_kernel, width=W),
        out_shape=(
            jax.ShapeDtypeStruct((NT, cout_p, L), jnp.bfloat16),   # conv out (bf16)
            jax.ShapeDtypeStruct((NT, cout_p, 2), jnp.float32),    # partial stats
        ),
        grid=(NT,),
        in_specs=[
            pl.BlockSpec((1, cin_p, Lf), lambda i: (i, 0, 0)),
            pl.BlockSpec((9, cout_p, cin_p), lambda i: (0, 0, 0)),  # resident weight
            pl.BlockSpec((3, L), lambda i: (0, 0)),
        ],
        out_specs=(
            pl.BlockSpec((1, cout_p, L), lambda i: (i, 0, 0)),
            pl.BlockSpec((1, cout_p, 2), lambda i: (i, 0, 0)),
        ),
        compiler_params=cparams,
        cost_estimate=cost1,
    )(slabs, w_cm, masks)

    # Tiny per-channel reduction + scale/shift precompute (f32, wrapper-side).
    s = jnp.sum(stats[:, :, 0], axis=0)
    ss = jnp.sum(stats[:, :, 1], axis=0)
    mean = s / M
    var = jnp.maximum(ss / M - mean * mean, 0.0)     # biased (training-mode) variance
    gamma_p = jnp.pad(gamma.astype(jnp.float32), (0, cout_p - Cout),
                      constant_values=1.0)
    beta_p = jnp.pad(beta.astype(jnp.float32), (0, cout_p - Cout))
    scale = gamma_p * jax.lax.rsqrt(var + EPS)
    shift = beta_p - mean * scale
    scale_shift = jnp.stack([scale, shift], axis=1)               # (cout_p, 2)

    cost2 = pl.CostEstimate(
        flops=3 * NT * cout_p * L,
        transcendentals=0,
        bytes_accessed=NT * cout_p * L * (2 + 4) + cout_p * 2 * 4,
    )

    out3 = pl.pallas_call(
        _bn_relu_kernel,
        out_shape=jax.ShapeDtypeStruct((N, cout_p, H * W), jnp.float32),
        grid=(NT,),
        in_specs=[
            pl.BlockSpec((1, cout_p, L), lambda i: (i, 0, 0)),
            pl.BlockSpec((cout_p, 2), lambda i: (0, 0)),
        ],
        out_specs=pl.BlockSpec((1, cout_p, L), lambda i: (i // T, 0, i % T)),
        compiler_params=cparams,
        cost_estimate=cost2,
    )(y, scale_shift)

    # Cheap epilogue: channel slice is a no-op when Cout % 8 == 0, and the
    # reshape only splits the contiguous trailing H*W dim (no transpose pass).
    return out3[:, :Cout, :].reshape(N, Cout, H, W)


def _reference(x_nchw, weight, bias, gamma, beta):
    # Pure-JAX f32 reference: conv2d (pad=1, with bias) + training-mode BN + ReLU.
    y = jax.lax.conv_general_dilated(
        x_nchw, weight, window_strides=(1, 1), padding=((1, 1), (1, 1)),
        dimension_numbers=("NCHW", "OIHW", "NCHW"))
    y = y + bias[None, :, None, None]
    mean = jnp.mean(y, axis=(0, 2, 3), keepdims=True)
    var = jnp.mean((y - mean) ** 2, axis=(0, 2, 3), keepdims=True)
    y = (y - mean) * jax.lax.rsqrt(var + EPS)
    y = gamma[None, :, None, None] * y + beta[None, :, None, None]
    return jnp.maximum(y, 0.0)


if __name__ == "__main__":
    key = jax.random.PRNGKey(0)
    k_x, k_w, k_b, k_g, k_e = jax.random.split(key, 5)

    N, Cin, H, W = 2, 4, 16, 16
    Cout, KS, PAD = 8, 3, 1

    x = jax.random.normal(k_x, (N, Cin, H, W), dtype=jnp.float32)

    fan_in = Cin * KS * KS
    weight = jax.random.normal(k_w, (Cout, Cin, KS, KS), dtype=jnp.float32) / jnp.sqrt(fan_in)
    bias = jax.random.normal(k_b, (Cout,), dtype=jnp.float32) * 0.5   # cancels under BN
    gamma = 1.0 + 0.2 * jax.random.normal(k_g, (Cout,), dtype=jnp.float32)
    beta = 0.2 * jax.random.normal(k_e, (Cout,), dtype=jnp.float32)

    out = conv2d_bn_relu_forward(x, weight, bias, gamma, beta,
                                 kernel_size=KS, padding=PAD)
    out = jax.block_until_ready(out)

    ref = _reference(x, weight, bias, gamma, beta)
    assert out.shape == (N, Cout, H, W)
    # bf16 MXU operands + bf16 intermediate -> bf16-level tolerance.
    assert jnp.allclose(out, ref, atol=5e-2, rtol=5e-2), \
        float(jnp.max(jnp.abs(out - ref)))

    print("KERNEL_OK")
</pallas_src>

<mosaic_0001>
module attributes {stable_mosaic.version = 11 : i64} {
  func.func @_conv_stats_kernel(%arg0: i32, %arg1: memref<1x8x384xbf16, #tpu.memory_space<vmem>>, %arg2: memref<9x8x8xbf16, #tpu.memory_space<vmem>>, %arg3: memref<3x256xbf16, #tpu.memory_space<vmem>>, %arg4: memref<1x8x256xbf16, #tpu.memory_space<vmem>>, %arg5: memref<1x8x2xf32, #tpu.memory_space<vmem>>) attributes {dimension_semantics = [#tpu.dimension_semantics<parallel>], iteration_bounds = array<i64: 2>, scalar_prefetch = 0 : i64, scratch_operands = 0 : i64, tpu.core_type = #tpu.core_type<tc>, window_params = [{transform_indices = @transform_0, window_bounds = array<i64: 1, 8, 384>}, {pipeline_mode = #tpu.pipeline_mode<synchronous>, transform_indices = @transform_1, window_bounds = array<i64: 9, 8, 8>}, {pipeline_mode = #tpu.pipeline_mode<synchronous>, transform_indices = @transform_2, window_bounds = array<i64: 3, 256>}, {transform_indices = @transform_3, window_bounds = array<i64: 1, 8, 256>}, {transform_indices = @transform_4, window_bounds = array<i64: 1, 8, 2>}]} {
    %cst = arith.constant 0.000000e+00 : f32
    %0 = vector.broadcast %cst : f32 to vector<8x256xf32>
    %c0 = arith.constant 0 : index
    %c0_0 = arith.constant 0 : index
    %c0_1 = arith.constant 0 : index
    %1 = vector.load %arg1[%c0, %c0_0, %c0_1] : memref<1x8x384xbf16, #tpu.memory_space<vmem>>, vector<1x8x256xbf16>
    %2 = vector.shape_cast %1 : vector<1x8x256xbf16> to vector<8x256xbf16>
    %c0_2 = arith.constant 0 : index
    %c0_3 = arith.constant 0 : index
    %3 = vector.load %arg3[%c0_2, %c0_3] : memref<3x256xbf16, #tpu.memory_space<vmem>>, vector<1x256xbf16>
    %4 = vector.shape_cast %3 : vector<1x256xbf16> to vector<256xbf16>
    %5 = vector.shape_cast %4 : vector<256xbf16> to vector<1x256xbf16>
    %6 = vector.broadcast %5 : vector<1x256xbf16> to vector<8x256xbf16>
    %7 = arith.mulf %2, %6 : vector<8x256xbf16>
    %c0_4 = arith.constant 0 : index
    %c0_5 = arith.constant 0 : index
    %c0_6 = arith.constant 0 : index
    %8 = vector.load %arg2[%c0_4, %c0_5, %c0_6] : memref<9x8x8xbf16, #tpu.memory_space<vmem>>, vector<1x8x8xbf16>
    %9 = vector.shape_cast %8 : vector<1x8x8xbf16> to vector<8x8xbf16>
    %cst_7 = arith.constant dense<0.000000e+00> : vector<8x256xf32>
    %10 = tpu.matmul %9, %7, %cst_7 {dimension_numbers = #tpu.dot_dimension_numbers<[1], [0], [0], [1], [0, 0, 1, 1], [], []>} : vector<8x8xbf16>, vector<8x256xbf16>, vector<8x256xf32> -> vector<8x256xf32>
    %11 = arith.addf %0, %10 : vector<8x256xf32>
    %c0_8 = arith.constant 0 : index
    %c0_9 = arith.constant 0 : index
    %c1 = arith.constant 1 : index
    %12 = vector.load %arg1[%c0_8, %c0_9, %c1] : memref<1x8x384xbf16, #tpu.memory_space<vmem>>, vector<1x8x256xbf16>
    %13 = vector.shape_cast %12 : vector<1x8x256xbf16> to vector<8x256xbf16>
    %c1_10 = arith.constant 1 : index
    %c0_11 = arith.constant 0 : index
    %c0_12 = arith.constant 0 : index
    %14 = vector.load %arg2[%c1_10, %c0_11, %c0_12] : memref<9x8x8xbf16, #tpu.memory_space<vmem>>, vector<1x8x8xbf16>
    %15 = vector.shape_cast %14 : vector<1x8x8xbf16> to vector<8x8xbf16>
    %cst_13 = arith.constant dense<0.000000e+00> : vector<8x256xf32>
    %16 = tpu.matmul %15, %13, %cst_13 {dimension_numbers = #tpu.dot_dimension_numbers<[1], [0], [0], [1], [0, 0, 1, 1], [], []>} : vector<8x8xbf16>, vector<8x256xbf16>, vector<8x256xf32> -> vector<8x256xf32>
    %17 = arith.addf %11, %16 : vector<8x256xf32>
    %c0_14 = arith.constant 0 : index
    %c0_15 = arith.constant 0 : index
    %c2 = arith.constant 2 : index
    %18 = vector.load %arg1[%c0_14, %c0_15, %c2] : memref<1x8x384xbf16, #tpu.memory_space<vmem>>, vector<1x8x256xbf16>
    %19 = vector.shape_cast %18 : vector<1x8x256xbf16> to vector<8x256xbf16>
    %c2_16 = arith.constant 2 : index
    %c0_17 = arith.constant 0 : index
    %20 = vector.load %arg3[%c2_16, %c0_17] : memref<3x256xbf16, #tpu.memory_space<vmem>>, vector<1x256xbf16>
    %21 = vector.shape_cast %20 : vector<1x256xbf16> to vector<256xbf16>
    %22 = vector.shape_cast %21 : vector<256xbf16> to vector<1x256xbf16>
    %23 = vector.broadcast %22 : vector<1x256xbf16> to vector<8x256xbf16>
    %24 = arith.mulf %19, %23 : vector<8x256xbf16>
    %c2_18 = arith.constant 2 : index
    %c0_19 = arith.constant 0 : index
    %c0_20 = arith.constant 0 : index
    %25 = vector.load %arg2[%c2_18, %c0_19, %c0_20] : memref<9x8x8xbf16, #tpu.memory_space<vmem>>, vector<1x8x8xbf16>
    %26 = vector.shape_cast %25 : vector<1x8x8xbf16> to vector<8x8xbf16>
    %cst_21 = arith.constant dense<0.000000e+00> : vector<8x256xf32>
    %27 = tpu.matmul %26, %24, %cst_21 {dimension_numbers = #tpu.dot_dimension_numbers<[1], [0], [0], [1], [0, 0, 1, 1], [], []>} : vector<8x8xbf16>, vector<8x256xbf16>, vector<8x256xf32> -> vector<8x256xf32>
    %28 = arith.addf %17, %27 : vector<8x256xf32>
    %c0_22 = arith.constant 0 : index
    %c0_23 = arith.constant 0 : index
    %c16 = arith.constant 16 : index
    %29 = vector.load %arg1[%c0_22, %c0_23, %c16] : memref<1x8x384xbf16, #tpu.memory_space<vmem>>, vector<1x8x256xbf16>
    %30 = vector.shape_cast %29 : vector<1x8x256xbf16> to vector<8x256xbf16>
    %c0_24 = arith.constant 0 : index
    %c0_25 = arith.constant 0 : index
    %31 = vector.load %arg3[%c0_24, %c0_25] : memref<3x256xbf16, #tpu.memory_space<vmem>>, vector<1x256xbf16>
    %32 = vector.shape_cast %31 : vector<1x256xbf16> to vector<256xbf16>
    %33 = vector.shape_cast %32 : vector<256xbf16> to vector<1x256xbf16>
    %34 = vector.broadcast %33 : vector<1x256xbf16> to vector<8x256xbf16>
    %35 = arith.mulf %30, %34 : vector<8x256xbf16>
    %c3 = arith.constant 3 : index
    %c0_26 = arith.constant 0 : index
    %c0_27 = arith.constant 0 : index
    %36 = vector.load %arg2[%c3, %c0_26, %c0_27] : memref<9x8x8xbf16, #tpu.memory_space<vmem>>, vector<1x8x8xbf16>
    %37 = vector.shape_cast %36 : vector<1x8x8xbf16> to vector<8x8xbf16>
    %cst_28 = arith.constant dense<0.000000e+00> : vector<8x256xf32>
    %38 = tpu.matmul %37, %35, %cst_28 {dimension_numbers = #tpu.dot_dimension_numbers<[1], [0], [0], [1], [0, 0, 1, 1], [], []>} : vector<8x8xbf16>, vector<8x256xbf16>, vector<8x256xf32> -> vector<8x256xf32>
    %39 = arith.addf %28, %38 : vector<8x256xf32>
    %c0_29 = arith.constant 0 : index
    %c0_30 = arith.constant 0 : index
    %c17 = arith.constant 17 : index
    %40 = vector.load %arg1[%c0_29, %c0_30, %c17] : memref<1x8x384xbf16, #tpu.memory_space<vmem>>, vector<1x8x256xbf16>
    %41 = vector.shape_cast %40 : vector<1x8x256xbf16> to vector<8x256xbf16>
    %c4 = arith.constant 4 : index
    %c0_31 = arith.constant 0 : index
    %c0_32 = arith.constant 0 : index
    %42 = vector.load %arg2[%c4, %c0_31, %c0_32] : memref<9x8x8xbf16, #tpu.memory_space<vmem>>, vector<1x8x8xbf16>
    %43 = vector.shape_cast %42 : vector<1x8x8xbf16> to vector<8x8xbf16>
    %cst_33 = arith.constant dense<0.000000e+00> : vector<8x256xf32>
    %44 = tpu.matmul %43, %41, %cst_33 {dimension_numbers = #tpu.dot_dimension_numbers<[1], [0], [0], [1], [0, 0, 1, 1], [], []>} : vector<8x8xbf16>, vector<8x256xbf16>, vector<8x256xf32> -> vector<8x256xf32>
    %45 = arith.addf %39, %44 : vector<8x256xf32>
    %c0_34 = arith.constant 0 : index
    %c0_35 = arith.constant 0 : index
    %c18 = arith.constant 18 : index
    %46 = vector.load %arg1[%c0_34, %c0_35, %c18] : memref<1x8x384xbf16, #tpu.memory_space<vmem>>, vector<1x8x256xbf16>
    %47 = vector.shape_cast %46 : vector<1x8x256xbf16> to vector<8x256xbf16>
    %c2_36 = arith.constant 2 : index
    %c0_37 = arith.constant 0 : index
    %48 = vector.load %arg3[%c2_36, %c0_37] : memref<3x256xbf16, #tpu.memory_space<vmem>>, vector<1x256xbf16>
    %49 = vector.shape_cast %48 : vector<1x256xbf16> to vector<256xbf16>
    %50 = vector.shape_cast %49 : vector<256xbf16> to vector<1x256xbf16>
    %51 = vector.broadcast %50 : vector<1x256xbf16> to vector<8x256xbf16>
    %52 = arith.mulf %47, %51 : vector<8x256xbf16>
    %c5 = arith.constant 5 : index
    %c0_38 = arith.constant 0 : index
    %c0_39 = arith.constant 0 : index
    %53 = vector.load %arg2[%c5, %c0_38, %c0_39] : memref<9x8x8xbf16, #tpu.memory_space<vmem>>, vector<1x8x8xbf16>
    %54 = vector.shape_cast %53 : vector<1x8x8xbf16> to vector<8x8xbf16>
    %cst_40 = arith.constant dense<0.000000e+00> : vector<8x256xf32>
    %55 = tpu.matmul %54, %52, %cst_40 {dimension_numbers = #tpu.dot_dimension_numbers<[1], [0], [0], [1], [0, 0, 1, 1], [], []>} : vector<8x8xbf16>, vector<8x256xbf16>, vector<8x256xf32> -> vector<8x256xf32>
    %56 = arith.addf %45, %55 : vector<8x256xf32>
    %c0_41 = arith.constant 0 : index
    %c0_42 = arith.constant 0 : index
    %c32 = arith.constant 32 : index
    %57 = vector.load %arg1[%c0_41, %c0_42, %c32] : memref<1x8x384xbf16, #tpu.memory_space<vmem>>, vector<1x8x256xbf16>
    %58 = vector.shape_cast %57 : vector<1x8x256xbf16> to vector<8x256xbf16>
    %c0_43 = arith.constant 0 : index
    %c0_44 = arith.constant 0 : index
    %59 = vector.load %arg3[%c0_43, %c0_44] : memref<3x256xbf16, #tpu.memory_space<vmem>>, vector<1x256xbf16>
    %60 = vector.shape_cast %59 : vector<1x256xbf16> to vector<256xbf16>
    %61 = vector.shape_cast %60 : vector<256xbf16> to vector<1x256xbf16>
    %62 = vector.broadcast %61 : vector<1x256xbf16> to vector<8x256xbf16>
    %63 = arith.mulf %58, %62 : vector<8x256xbf16>
    %c6 = arith.constant 6 : index
    %c0_45 = arith.constant 0 : index
    %c0_46 = arith.constant 0 : index
    %64 = vector.load %arg2[%c6, %c0_45, %c0_46] : memref<9x8x8xbf16, #tpu.memory_space<vmem>>, vector<1x8x8xbf16>
    %65 = vector.shape_cast %64 : vector<1x8x8xbf16> to vector<8x8xbf16>
    %cst_47 = arith.constant dense<0.000000e+00> : vector<8x256xf32>
    %66 = tpu.matmul %65, %63, %cst_47 {dimension_numbers = #tpu.dot_dimension_numbers<[1], [0], [0], [1], [0, 0, 1, 1], [], []>} : vector<8x8xbf16>, vector<8x256xbf16>, vector<8x256xf32> -> vector<8x256xf32>
    %67 = arith.addf %56, %66 : vector<8x256xf32>
    %c0_48 = arith.constant 0 : index
    %c0_49 = arith.constant 0 : index
    %c33 = arith.constant 33 : index
    %68 = vector.load %arg1[%c0_48, %c0_49, %c33] : memref<1x8x384xbf16, #tpu.memory_space<vmem>>, vector<1x8x256xbf16>
    %69 = vector.shape_cast %68 : vector<1x8x256xbf16> to vector<8x256xbf16>
    %c7 = arith.constant 7 : index
    %c0_50 = arith.constant 0 : index
    %c0_51 = arith.constant 0 : index
    %70 = vector.load %arg2[%c7, %c0_50, %c0_51] : memref<9x8x8xbf16, #tpu.memory_space<vmem>>, vector<1x8x8xbf16>
    %71 = vector.shape_cast %70 : vector<1x8x8xbf16> to vector<8x8xbf16>
    %cst_52 = arith.constant dense<0.000000e+00> : vector<8x256xf32>
    %72 = tpu.matmul %71, %69, %cst_52 {dimension_numbers = #tpu.dot_dimension_numbers<[1], [0], [0], [1], [0, 0, 1, 1], [], []>} : vector<8x8xbf16>, vector<8x256xbf16>, vector<8x256xf32> -> vector<8x256xf32>
    %73 = arith.addf %67, %72 : vector<8x256xf32>
    %c0_53 = arith.constant 0 : index
    %c0_54 = arith.constant 0 : index
    %c34 = arith.constant 34 : index
    %74 = vector.load %arg1[%c0_53, %c0_54, %c34] : memref<1x8x384xbf16, #tpu.memory_space<vmem>>, vector<1x8x256xbf16>
    %75 = vector.shape_cast %74 : vector<1x8x256xbf16> to vector<8x256xbf16>
    %c2_55 = arith.constant 2 : index
    %c0_56 = arith.constant 0 : index
    %76 = vector.load %arg3[%c2_55, %c0_56] : memref<3x256xbf16, #tpu.memory_space<vmem>>, vector<1x256xbf16>
    %77 = vector.shape_cast %76 : vector<1x256xbf16> to vector<256xbf16>
    %78 = vector.shape_cast %77 : vector<256xbf16> to vector<1x256xbf16>
    %79 = vector.broadcast %78 : vector<1x256xbf16> to vector<8x256xbf16>
    %80 = arith.mulf %75, %79 : vector<8x256xbf16>
    %c8 = arith.constant 8 : index
    %c0_57 = arith.constant 0 : index
    %c0_58 = arith.constant 0 : index
    %81 = vector.load %arg2[%c8, %c0_57, %c0_58] : memref<9x8x8xbf16, #tpu.memory_space<vmem>>, vector<1x8x8xbf16>
    %82 = vector.shape_cast %81 : vector<1x8x8xbf16> to vector<8x8xbf16>
    %cst_59 = arith.constant dense<0.000000e+00> : vector<8x256xf32>
    %83 = tpu.matmul %82, %80, %cst_59 {dimension_numbers = #tpu.dot_dimension_numbers<[1], [0], [0], [1], [0, 0, 1, 1], [], []>} : vector<8x8xbf16>, vector<8x256xbf16>, vector<8x256xf32> -> vector<8x256xf32>
    %84 = arith.addf %73, %83 : vector<8x256xf32>
    %85 = arith.truncf %84 : vector<8x256xf32> to vector<8x256xbf16>
    %c0_60 = arith.constant 0 : index
    %c0_61 = arith.constant 0 : index
    %c0_62 = arith.constant 0 : index
    %86 = vector.load %arg4[%c0_60, %c0_61, %c0_62] : memref<1x8x256xbf16, #tpu.memory_space<vmem>>, vector<1x8x256xbf16>
    %87 = vector.shape_cast %86 : vector<1x8x256xbf16> to vector<8x256xbf16>
    %88 = vector.shape_cast %85 : vector<8x256xbf16> to vector<1x8x256xbf16>
    tpu.vector_store %arg4[%c0_60, %c0_61, %c0_62], %88 {strides = array<i32>} : memref<1x8x256xbf16, #tpu.memory_space<vmem>>, vector<1x8x256xbf16>,
    %cst_63 = arith.constant dense<0.000000e+00> : vector<8xf32>
    %89 = vector.multi_reduction <add>, %84, %cst_63 [1] : vector<8x256xf32> to vector<8xf32>
    %90 = vector.shape_cast %89 : vector<8xf32> to vector<8x1xf32>
    %c0_64 = arith.constant 0 : index
    %c0_65 = arith.constant 0 : index
    %c0_66 = arith.constant 0 : index
    %91 = vector.load %arg5[%c0_64, %c0_65, %c0_66] : memref<1x8x2xf32, #tpu.memory_space<vmem>>, vector<1x8x1xf32>
    %92 = vector.shape_cast %91 : vector<1x8x1xf32> to vector<8x1xf32>
    %93 = vector.shape_cast %90 : vector<8x1xf32> to vector<1x8x1xf32>
    tpu.vector_store %arg5[%c0_64, %c0_65, %c0_66], %93 {strides = array<i32>} : memref<1x8x2xf32, #tpu.memory_space<vmem>>, vector<1x8x1xf32>,
    %94 = arith.mulf %84, %84 : vector<8x256xf32>
    %cst_67 = arith.constant dense<0.000000e+00> : vector<8xf32>
    %95 = vector.multi_reduction <add>, %94, %cst_67 [1] : vector<8x256xf32> to vector<8xf32>
    %96 = vector.shape_cast %95 : vector<8xf32> to vector<8x1xf32>
    %c0_68 = arith.constant 0 : index
    %c0_69 = arith.constant 0 : index
    %c1_70 = arith.constant 1 : index
    %97 = vector.load %arg5[%c0_68, %c0_69, %c1_70] : memref<1x8x2xf32, #tpu.memory_space<vmem>>, vector<1x8x1xf32>
    %98 = vector.shape_cast %97 : vector<1x8x1xf32> to vector<8x1xf32>
    %99 = vector.shape_cast %96 : vector<8x1xf32> to vector<1x8x1xf32>
    tpu.vector_store %arg5[%c0_68, %c0_69, %c1_70], %99 {strides = array<i32>} : memref<1x8x2xf32, #tpu.memory_space<vmem>>, vector<1x8x1xf32>,
    return
  }
  func.func @transform_0(%arg0: i32) -> (i32, i32, i32) {
    %c0_i32 = arith.constant 0 : i32
    %c0_i32_0 = arith.constant 0 : i32
    %c0_i32_1 = arith.constant 0 : i32
    return %arg0, %c0_i32, %c0_i32_0 : i32, i32, i32
  }
  func.func @transform_1(%arg0: i32) -> (i32, i32, i32) {
    %c0_i32 = arith.constant 0 : i32
    %c0_i32_0 = arith.constant 0 : i32
    %c0_i32_1 = arith.constant 0 : i32
    %c0_i32_2 = arith.constant 0 : i32
    return %c0_i32, %c0_i32_0, %c0_i32_1 : i32, i32, i32
  }
  func.func @transform_2(%arg0: i32) -> (i32, i32) {
    %c0_i32 = arith.constant 0 : i32
    %c0_i32_0 = arith.constant 0 : i32
    %c0_i32_1 = arith.constant 0 : i32
    return %c0_i32, %c0_i32_0 : i32, i32
  }
  func.func @transform_3(%arg0: i32) -> (i32, i32, i32) {
    %c0_i32 = arith.constant 0 : i32
    %c0_i32_0 = arith.constant 0 : i32
    %c0_i32_1 = arith.constant 0 : i32
    return %arg0, %c0_i32, %c0_i32_0 : i32, i32, i32
  }
  func.func @transform_4(%arg0: i32) -> (i32, i32, i32) {
    %c0_i32 = arith.constant 0 : i32
    %c0_i32_0 = arith.constant 0 : i32
    %c0_i32_1 = arith.constant 0 : i32
    return %arg0, %c0_i32, %c0_i32_0 : i32, i32, i32
  }
}

</mosaic_0001>

<llo_original>
// kernel: tpu_custom_call.1
$region0: #{tpu_custom_call.1}
  #allocation0 [shape = 'u32[]', space=smem, size = 0x4, offset = 0x4, fixed_abs, tag = 'smem constant byte address 0x4 - core index']
  #allocation1 [shape = 'u32[144,128]{1,0:T(1,128)}', space=vmem, size = 0x12000, scoped, tag = 'internal scratch']
  %s0 = inlined_call_operand.vmem [shape: bf16[2,8,384], index: 0, kind: input, shape index: {}]
  %s1 = inlined_call_operand.vmem [shape: bf16[9,8,8], index: 1, kind: input, shape index: {}]
  %s2 = inlined_call_operand.vmem [shape: bf16[3,256], index: 2, kind: input, shape index: {}]
  %s3 = inlined_call_operand.hbm [shape: bf16[2,8,256], index: 3, kind: output, shape index: {0}]
  %s4 = inlined_call_operand.vmem [shape: f32[2,8,2], index: 4, kind: output, shape index: {1}]
  %5 = xla_tuple %s3, %s4
  %s6 = sld [smem:[#allocation0]]
  $region53: #{tpu_custom_call.1} parent=0
    _
  %s8 = ssub.s32 1, %s6
  %s9 = scalar_select 0, %s8, %s6
  $region1: #{tpu_custom_call.1} parent=0
    #allocation2 [shape = 'u8[8192]{0}', space=vmem, size = 0x2000, scoped, tag = 'output window, operand 0']
    #allocation3 [shape = 's32[2]{0}', space=sflag, size = 0x8, scoped, tag = 'scoped memory for tpu_custom_call.1']
    %10 = vsyncpa [#allocation3], 0
    %s11 = scalar_lea.sflag [#allocation3], 1
    %12 = vsyncpa %s11, 0
    loop: start=0, step=1, limit=4
    $region2: #{tpu_custom_call.1} parent=1 // loop_pre_header
      _
    $region3: #{tpu_custom_call.1} parent=1 // loop_header
      %s14 = sphi 0, %s18
      %p15 = scmp.ge.s32.totalorder %s14, 4
      %s24 = sphi 0, %s26
      %s27 = sphi 0, %s24
      %s28 = sphi 0, %s27
      %s44 = sphi 0, %s28
      %s48 = sphi 0, %s48
      %s50 = sphi 0, %s48
      %s51 = sphi 0, %s50
      %s65 = sphi 0, %s51
      %s69 = sphi 0, %s69
      %s71 = sphi 0, %s69
      %s72 = sphi 0, %s71
      %s86 = sphi 0, %s72
      %s92 = sphi 0, %s94
      %s95 = sphi 0, %s92
      %s96 = sphi 0, %s95
      %s112 = sphi 0, %s96
      %s118 = sphi 0, %s120
      %s121 = sphi 0, %s118
      %s122 = sphi 0, %s121
      %s138 = sphi 0, %s122
    $region4: #{tpu_custom_call.1} parent=1 // loop_header_branch
      %17 = sbr.rel (%p15) target = $region8
    $region5: #{tpu_custom_call.1} parent=1 // loop_body
      %s19 = ssub.s32 %s14, 1
      %s20 = ssub.s32 %s14, 2
      %s21 = sadd.s32 %s14, 1
      %s22 = ssub.s32 %s14, %s21
      %p23 = scmp.eq.s32.totalorder %s22, 0
      %s25 = sadd.s32 %s24, 1
      %s26 = scalar_select %p23, %s24, %s25
      %p29 = pneg %p23
      %p30 = scmp.eq.s32.totalorder %s14, 1
      %p31 = por %p29, %p30
      %p32 = scmp.ne.s32.totalorder %s24, %s27
      %p33 = scmp.eq.s32.totalorder %s14, 0
      %p34 = por %p32, %p33
      %p35 = scmp.ne.s32.totalorder %s24, %s27
      %p36 = scmp.eq.s32.totalorder %s19, 1
      %p37 = por %p35, %p36
      %p38 = scmp.ne.s32.totalorder %s27, %s28
      %p39 = scmp.eq.s32.totalorder %s19, 0
      %p40 = por %p38, %p39
      %p41 = scmp.ne.s32.totalorder %s27, %s28
      %p42 = scmp.eq.s32.totalorder %s20, 1
      %p43 = por %p41, %p42
      %p45 = scmp.ne.s32.totalorder %s28, %s44
      %p46 = scmp.eq.s32.totalorder %s20, 0
      %p47 = por %p45, %p46
      %s49 = sadd.s32 %s48, 1
      %p52 = scmp.eq.s32.totalorder %s14, 1
      %p53 = scmp.ne.s32.totalorder %s48, %s50
      %p54 = scmp.eq.s32.totalorder %s14, 0
      %p55 = por %p53, %p54
      %p56 = scmp.ne.s32.totalorder %s48, %s50
      %p57 = scmp.eq.s32.totalorder %s19, 1
      %p58 = por %p56, %p57
      %p59 = scmp.ne.s32.totalorder %s50, %s51
      %p60 = scmp.eq.s32.totalorder %s19, 0
      %p61 = por %p59, %p60
      %p62 = scmp.ne.s32.totalorder %s50, %s51
      %p63 = scmp.eq.s32.totalorder %s20, 1
      %p64 = por %p62, %p63
      %p66 = scmp.ne.s32.totalorder %s51, %s65
      %p67 = scmp.eq.s32.totalorder %s20, 0
      %p68 = por %p66, %p67
      %s70 = sadd.s32 %s69, 1
      %p73 = scmp.eq.s32.totalorder %s14, 1
      %p74 = scmp.ne.s32.totalorder %s69, %s71
      %p75 = scmp.eq.s32.totalorder %s14, 0
      %p76 = por %p74, %p75
      %p77 = scmp.ne.s32.totalorder %s69, %s71
      %p78 = scmp.eq.s32.totalorder %s19, 1
      %p79 = por %p77, %p78
      %p80 = scmp.ne.s32.totalorder %s71, %s72
      %p81 = scmp.eq.s32.totalorder %s19, 0
      %p82 = por %p80, %p81
      %p83 = scmp.ne.s32.totalorder %s71, %s72
      %p84 = scmp.eq.s32.totalorder %s20, 1
      %p85 = por %p83, %p84
      %p87 = scmp.ne.s32.totalorder %s72, %s86
      %p88 = scmp.eq.s32.totalorder %s20, 0
      %p89 = por %p87, %p88
      %s90 = ssub.s32 %s14, %s21
      %p91 = scmp.eq.s32.totalorder %s90, 0
      %s93 = sadd.s32 %s92, 1
      %s94 = scalar_select %p91, %s92, %s93
      %p97 = pneg %p91
      %p98 = scmp.eq.s32.totalorder %s14, 1
      %p99 = por %p97, %p98
      %p100 = scmp.ne.s32.totalorder %s92, %s95
      %p101 = scmp.eq.s32.totalorder %s14, 0
      %p102 = por %p100, %p101
      %p103 = scmp.ne.s32.totalorder %s92, %s95
      %p104 = scmp.eq.s32.totalorder %s19, 1
      %p105 = por %p103, %p104
      %p106 = scmp.ne.s32.totalorder %s95, %s96
      %p107 = scmp.eq.s32.totalorder %s19, 0
      %p108 = por %p106, %p107
      %p109 = scmp.ne.s32.totalorder %s95, %s96
      %p110 = scmp.eq.s32.totalorder %s20, 1
      %p111 = por %p109, %p110
      %p113 = scmp.ne.s32.totalorder %s96, %s112
      %p114 = scmp.eq.s32.totalorder %s20, 0
      %p115 = por %p113, %p114
      %s116 = ssub.s32 %s14, %s21
      %p117 = scmp.eq.s32.totalorder %s116, 0
      %s119 = sadd.s32 %s118, 1
      %s120 = scalar_select %p117, %s118, %s119
      %p123 = pneg %p117
      %p124 = scmp.eq.s32.totalorder %s14, 1
      %p125 = por %p123, %p124
      %p126 = scmp.ne.s32.totalorder %s118, %s121
      %p127 = scmp.eq.s32.totalorder %s14, 0
      %p128 = por %p126, %p127
      %p129 = scmp.ne.s32.totalorder %s118, %s121
      %p130 = scmp.eq.s32.totalorder %s19, 1
      %p131 = por %p129, %p130
      %p132 = scmp.ne.s32.totalorder %s121, %s122
      %p133 = scmp.eq.s32.totalorder %s19, 0
      %p134 = por %p132, %p133
      %p135 = scmp.ne.s32.totalorder %s121, %s122
      %p136 = scmp.eq.s32.totalorder %s20, 1
      %p137 = por %p135, %p136
      %p139 = scmp.ne.s32.totalorder %s122, %s138
      %p140 = scmp.eq.s32.totalorder %s20, 0
      %p141 = por %p139, %p140
      %p142 = scmp.le.s32.totalorder 1, %s14
      %p143 = scmp.lt.s32.totalorder %s14, 3
      %p144 = pnand %p142, %p143
      %p145 = pneg %p144
      // Predicated region
      $region9: #{tpu_custom_call.1} parent=5 // pred_check
        _
      $region10: #{tpu_custom_call.1} parent=5 // pred_check_branch
        %147 = sbr.rel (%p144) target = $region12
      $region11: #{tpu_custom_call.1} parent=5 // pred_region
        %s148 = ssub.s32 %s14, 1
        // Predicated region
        $region13: #{tpu_custom_call.1} parent=11 // pred_check
          %p149 = pneg %p61
        $region14: #{tpu_custom_call.1} parent=11 // pred_check_branch
          %151 = sbr.rel (%p149) target = $region16
        $region15: #{tpu_custom_call.1} parent=11 // pred_region
          _
        $region16: #{tpu_custom_call.1} parent=11 // pred_fallthru
          _
        // Predicated region
        $region17: #{tpu_custom_call.1} parent=11 // pred_check
          %p152 = pneg %p82
        $region18: #{tpu_custom_call.1} parent=11 // pred_check_branch
          %154 = sbr.rel (%p152) target = $region20
        $region19: #{tpu_custom_call.1} parent=11 // pred_region
          _
        $region20: #{tpu_custom_call.1} parent=11 // pred_fallthru
          _
      $region12: #{tpu_custom_call.1} parent=5 // pred_fallthru
        _
      %p155 = scmp.lt.s32.totalorder %s14, 2
      // Predicated region
      $region21: #{tpu_custom_call.1} parent=5 // pred_check
        %p156 = pneg %p155
      $region22: #{tpu_custom_call.1} parent=5 // pred_check_branch
        %158 = sbr.rel (%p156) target = $region24
      $region23: #{tpu_custom_call.1} parent=5 // pred_region
        // Predicated region
        $region25: #{tpu_custom_call.1} parent=23 // pred_check
          %p159 = pneg %p34
        $region26: #{tpu_custom_call.1} parent=23 // pred_check_branch
          %161 = sbr.rel (%p159) target = $region28
        $region27: #{tpu_custom_call.1} parent=23 // pred_region
          %p162 = scmp.lt.s32.totalorder %s14, 1
          %s163 = scalar_select %p162, %s14, 1
          %s164 = smul.addr %s163, 3
          %s165 = smul.addr %s164, 4
          %s166 = scalar_lea.vmem %s0, %s165
        $region28: #{tpu_custom_call.1} parent=23 // pred_fallthru
          _
      $region24: #{tpu_custom_call.1} parent=5 // pred_fallthru
        _
      %p167 = scmp.le.s32.totalorder 1, %s14
      %p168 = scmp.lt.s32.totalorder %s14, 3
      %p169 = pnand %p167, %p168
      %p170 = pneg %p169
      // Predicated region
      $region29: #{tpu_custom_call.1} parent=5 // pred_check
        _
      $region30: #{tpu_custom_call.1} parent=5 // pred_check_branch
        %172 = sbr.rel (%p169) target = $region32
      $region31: #{tpu_custom_call.1} parent=5 // pred_region
        %s173 = ssub.s32 %s14, 1
        %p174 = scmp.lt.s32.totalorder %s19, 1
        %s175 = scalar_select %p174, %s19, 1
        %s176 = smul.addr %s175, 3
        %s177 = smul.addr %s176, 4
        %s178 = scalar_lea.vmem %s0, %s177
        %p179 = pneg %p40
        %p180 = pneg %p37
        %p181 = pneg %p61
        %p182 = pneg %p58
        %p183 = pneg %p82
        %p184 = pneg %p79
        %p185 = pneg %p108
        %p186 = pneg %p105
        %s187 = sand.u32 %s95, 1
        %s188 = scalar_lea.sflag [#allocation3], %s187
        %s189 = sand.u32 %s95, 1
        %s190 = smul.addr %s189, 8
        %s191 = scalar_lea.vmem [#allocation2], %s190
        %p192 = pneg %p134
        %p193 = pneg %p131
        %p194 = scmp.lt.s32.totalorder %s19, 1
        %s195 = scalar_select %p194, %s19, 1
        %s196 = smul.addr %s195, 8
        %s197 = scalar_lea.vmem %s4, %s196
        %p198 = scmp.lt.s32.totalorder %s19, 1
        %s199 = scalar_select %p198, %s19, 1
        %s200 = smul.addr %s199, 3
        %s201 = smul.addr %s200, 4
        %s202 = scalar_lea.vmem %s0, %s201
        %p203 = scmp.lt.s32.totalorder %s19, 1
        %s204 = scalar_select %p203, %s19, 1
        %s205 = smul.addr %s204, 8
        %s206 = scalar_lea.vmem %s4, %s205
        %v208 = vld [vmem:[%s202] sm:$0xff]
        %v209 = vld [vmem:[%s2] sm:$0x5]
        %v212 = vunpack.c.l.s4 1983009808
        %v213 = vunpack.c.0.s8 %v212
        %v214 = vlaneseq
        %v215 = vshrl.u32 %v214, 7
        %v216 = vsub.s32 %v213, %v215
        %v217 = vrot.slane %v209, %v216
        %v218 = vcombine.high %v217, %v217
        %v220 = vpack.i.b16 %v217, %v217
        %v222 = vlaneseq
        %v223 = vshrl.u32 %v222, 7
        %v224 = vsub.s32 0, %v223
        %v225 = vrot.slane %v220, %v224
        %v227 = vpack.i.b16 %v218, %v218
        %v229 = vlaneseq
        %v230 = vshrl.u32 %v229, 7
        %v231 = vsub.s32 0, %v230
        %v232 = vrot.slane %v227, %v231
        %v235 = vunpack.c.l.b16 %v225
        %v236 = vunpack.c.l.b16 %v232
        %v237 = vpack.c.b16 %v236, %v235
        %v239 = vmul.bf16 %v208, %v237
        %v240 = vld [vmem:[%s1] sm:$0xf]
        %v241 = vld [vmem:[%s202] sm:$0xff]
        %v242 = vld [vmem:[%s202 + $0x8] sm:$0xf]
        %s243 = scalar_lea.vmem %s1, 4
        %v244 = vld [vmem:[%s243] sm:$0xf]
        %v247 = vunpack.c.l.b16 %v241
        %v248 = vunpack.c.h.b16 %v241
        %v249 = vunpack.c.l.b16 %v242
        %v250 = vpack.c.b16 %v247, %v247
        %v251 = vpack.c.b16 %v248, %v248
        %v252 = vpack.c.b16 %v249, %v249
        %253 = vrot.lane.b32.xlu0 %v250, 127
        %v254 = vpop.permute.xlu0 %253
        %255 = vrot.lane.b32.xlu0 %v251, 127
        %v256 = vpop.permute.xlu0 %255
        %257 = vrot.lane.b32.xlu0 %v252, 127
        %v258 = vpop.permute.xlu0 %257
        %vm259 = vcmask 1039360
        %v260 = vsel %vm259, %v254, %v256
        %v261 = vsel %vm259, %v256, %v258
        %vm262 = vcmask 64512
        %v264 = vsel %vm262, %v244, 0
        %vm266 = vcmask 1043456
        %v268 = vsel %vm266, %v260, 0
        %v271 = vsel %vm266, %v261, 0
        %273 = vmatprep.subr.bf16.mxu0 %v271
        %274 = vmatpush1.bf16.msra.mxu0 %v268
        %275 = vmatprep.subr.bf16.mxu0 0
        %276 = vmatpush1.bf16.msra.mxu0 0
        %277 = vmatprep.subr.bf16.mxu0 0
        %278 = vmatpush1.bf16.msra.mxu0 0
        %279 = vmatprep.subr.bf16.mxu0 0
        %280 = vmatpush1.bf16.msra.mxu0 0
        %281 = vmatprep.subr.bf16.mxu0 0
        %282 = vmatpush1.bf16.msra.mxu0 0
        %283 = vmatprep.subr.bf16.mxu0 0
        %284 = vmatpush1.bf16.msra.mxu0 0
        %285 = vmatprep.subr.bf16.mxu0 0
        %286 = vmatpush1.bf16.msra.mxu0 0
        %287 = vmatprep.subr.bf16.mxu0 0
        %288 = vmatpush1.bf16.msra.mxu0 0
        %289 = vmatprep.subr.bf16.mxu0 0
        %290 = vmatpush1.bf16.msra.mxu0 0
        %291 = vmatprep.subr.bf16.mxu0 0
        %292 = vmatpush1.bf16.msra.mxu0 0
        %293 = vmatprep.subr.bf16.mxu0 0
        %294 = vmatpush1.bf16.msra.mxu0 0
        %295 = vmatprep.subr.bf16.mxu0 0
        %296 = vmatpush1.bf16.msra.mxu0 0
        %297 = vmatprep.subr.bf16.mxu0 0
        %298 = vmatpush1.bf16.msra.mxu0 0
        %299 = vmatprep.subr.bf16.mxu0 0
        %300 = vmatpush1.bf16.msra.mxu0 0
        %301 = vmatprep.subr.bf16.mxu0 0
        %302 = vmatpush1.bf16.msra.mxu0 0
        %303 = vmatprep.subr.bf16.mxu0 0
        %304 = vmatpush1.bf16.msra.mxu0 0
        %305 = vmatprep.mubr.bf16.mxu0 0
        %306 = vmatmul.mubr.bf16.gmra.mrb[0].mxu0 %v264
        %v307 = vpop.f32.mrb[0].mxu0
        %v308 = vadd.f32 0.0, %v307
        %v309 = vpop.f32.mrb[0].mxu0
        %v310 = vadd.f32 0.0, %v309
        %v311 = vpop.f32.mrb[0].mxu0
        %v312 = vpop.f32.mrb[0].mxu0
        %313 = vdwg.mxu0
        %v315 = vunpack.c.l.b16 %v239
        %v316 = vunpack.c.h.b16 %v239
        %v317 = vpack.c.b16 %v315, %v315
        %v318 = vpack.c.b16 %v316, %v316
        %v320 = vsel %vm262, %v240, 0
        %v323 = vsel %vm266, %v317, 0
        %v326 = vsel %vm266, %v318, 0
        %328 = vmatprep.subr.bf16.mxu0 %v326
        %329 = vmatpush1.bf16.msra.mxu0 %v323
        %330 = vmatprep.subr.bf16.mxu0 0
        %331 = vmatpush1.bf16.msra.mxu0 0
        %332 = vmatprep.subr.bf16.mxu0 0
        %333 = vmatpush1.bf16.msra.mxu0 0
        %334 = vmatprep.subr.bf16.mxu0 0
        %335 = vmatpush1.bf16.msra.mxu0 0
        %336 = vmatprep.subr.bf16.mxu0 0
        %337 = vmatpush1.bf16.msra.mxu0 0
        %338 = vmatprep.subr.bf16.mxu0 0
        %339 = vmatpush1.bf16.msra.mxu0 0
        %340 = vmatprep.subr.bf16.mxu0 0
        %341 = vmatpush1.bf16.msra.mxu0 0
        %342 = vmatprep.subr.bf16.mxu0 0
        %343 = vmatpush1.bf16.msra.mxu0 0
        %344 = vmatprep.subr.bf16.mxu0 0
        %345 = vmatpush1.bf16.msra.mxu0 0
        %346 = vmatprep.subr.bf16.mxu0 0
        %347 = vmatpush1.bf16.msra.mxu0 0
        %348 = vmatprep.subr.bf16.mxu0 0
        %349 = vmatpush1.bf16.msra.mxu0 0
        %350 = vmatprep.subr.bf16.mxu0 0
        %351 = vmatpush1.bf16.msra.mxu0 0
        %352 = vmatprep.subr.bf16.mxu0 0
        %353 = vmatpush1.bf16.msra.mxu0 0
        %354 = vmatprep.subr.bf16.mxu0 0
        %355 = vmatpush1.bf16.msra.mxu0 0
        %356 = vmatprep.subr.bf16.mxu0 0
        %357 = vmatpush1.bf16.msra.mxu0 0
        %358 = vmatprep.subr.bf16.mxu0 0
        %359 = vmatpush1.bf16.msra.mxu0 0
        %360 = vmatprep.mubr.bf16.mxu0 0
        %361 = vmatmul.mubr.bf16.gmra.mrb[0].mxu0 %v320
        %v362 = vpop.f32.mrb[0].mxu0
        %v363 = vadd.f32 %v308, %v362
        %v364 = vpop.f32.mrb[0].mxu0
        %v365 = vadd.f32 %v310, %v364
        %v366 = vpop.f32.mrb[0].mxu0
        %v367 = vpop.f32.mrb[0].mxu0
        %368 = vdwg.mxu0
        %v369 = vld [vmem:[%s2] sm:$0xa]
        %v372 = vunpack.c.l.s4 1983009808
        %v373 = vunpack.c.0.s8 %v372
        %v374 = vlaneseq
        %v375 = vshrl.u32 %v374, 7
        %v376 = vsub.s32 %v373, %v375
        %v377 = vrot.slane %v369, %v376
        %v378 = vcombine.high %v377, %v377
        %v380 = vpack.i.b16 %v377, %v377
        %v382 = vlaneseq
        %v383 = vshrl.u32 %v382, 7
        %v384 = vsub.s32 1, %v383
        %v385 = vrot.slane %v380, %v384
        %v387 = vpack.i.b16 %v378, %v378
        %v389 = vlaneseq
        %v390 = vshrl.u32 %v389, 7
        %v391 = vsub.s32 1, %v390
        %v392 = vrot.slane %v387, %v391
        %v395 = vunpack.c.l.b16 %v385
        %v396 = vunpack.c.l.b16 %v392
        %v397 = vpack.c.b16 %v396, %v395
        %398 = vrot.lane.b32.xlu0 %v397, 2
        %v399 = vpop.permute.xlu0 %398
        %v400 = vrot.slane %v399, 4
        %vm401 = vcmask 15360
        %v402 = vsel %vm401, %v400, %v399
        %v405 = vmul.bf16 %v241, %v402
        %v406 = vmul.bf16 %v242, %v400
        %s407 = scalar_lea.vmem %s1, 8
        %v408 = vld [vmem:[%s407] sm:$0xf]
        %v411 = vunpack.c.l.b16 %v405
        %v412 = vunpack.c.h.b16 %v405
        %v413 = vunpack.c.l.b16 %v406
        %v414 = vpack.c.b16 %v411, %v411
        %v415 = vpack.c.b16 %v412, %v412
        %v416 = vpack.c.b16 %v413, %v413
        %417 = vrot.lane.b32.xlu0 %v414, 126
        %v418 = vpop.permute.xlu0 %417
        %419 = vrot.lane.b32.xlu0 %v415, 126
        %v420 = vpop.permute.xlu0 %419
        %421 = vrot.lane.b32.xlu0 %v416, 126
        %v422 = vpop.permute.xlu0 %421
        %vm423 = vcmask 1031168
        %v424 = vsel %vm423, %v418, %v420
        %v425 = vsel %vm423, %v420, %v422
        %v427 = vsel %vm262, %v408, 0
        %v430 = vsel %vm266, %v424, 0
        %v433 = vsel %vm266, %v425, 0
        %435 = vmatprep.subr.bf16.mxu0 %v433
        %436 = vmatpush1.bf16.msra.mxu0 %v430
        %437 = vmatprep.subr.bf16.mxu0 0
        %438 = vmatpush1.bf16.msra.mxu0 0
        %439 = vmatprep.subr.bf16.mxu0 0
        %440 = vmatpush1.bf16.msra.mxu0 0
        %441 = vmatprep.subr.bf16.mxu0 0
        %442 = vmatpush1.bf16.msra.mxu0 0
        %443 = vmatprep.subr.bf16.mxu0 0
        %444 = vmatpush1.bf16.msra.mxu0 0
        %445 = vmatprep.subr.bf16.mxu0 0
        %446 = vmatpush1.bf16.msra.mxu0 0
        %447 = vmatprep.subr.bf16.mxu0 0
        %448 = vmatpush1.bf16.msra.mxu0 0
        %449 = vmatprep.subr.bf16.mxu0 0
        %450 = vmatpush1.bf16.msra.mxu0 0
        %451 = vmatprep.subr.bf16.mxu0 0
        %452 = vmatpush1.bf16.msra.mxu0 0
        %453 = vmatprep.subr.bf16.mxu0 0
        %454 = vmatpush1.bf16.msra.mxu0 0
        %455 = vmatprep.subr.bf16.mxu0 0
        %456 = vmatpush1.bf16.msra.mxu0 0
        %457 = vmatprep.subr.bf16.mxu0 0
        %458 = vmatpush1.bf16.msra.mxu0 0
        %459 = vmatprep.subr.bf16.mxu0 0
        %460 = vmatpush1.bf16.msra.mxu0 0
        %461 = vmatprep.subr.bf16.mxu0 0
        %462 = vmatpush1.bf16.msra.mxu0 0
        %463 = vmatprep.subr.bf16.mxu0 0
        %464 = vmatpush1.bf16.msra.mxu0 0
        %465 = vmatprep.subr.bf16.mxu0 0
        %466 = vmatpush1.bf16.msra.mxu0 0
        %467 = vmatprep.mubr.bf16.mxu0 0
        %468 = vmatmul.mubr.bf16.gmra.mrb[0].mxu0 %v427
        %v469 = vpop.f32.mrb[0].mxu0
        %v470 = vadd.f32 0.0, %v469
        %v471 = vpop.f32.mrb[0].mxu0
        %v472 = vadd.f32 0.0, %v471
        %v473 = vpop.f32.mrb[0].mxu0
        %v474 = vpop.f32.mrb[0].mxu0
        %475 = vdwg.mxu0
        %v476 = vadd.f32 %v363, %v470
        %v477 = vadd.f32 %v365, %v472
        %v478 = vld [vmem:[%s202] sm:$0xff]
        %v479 = vld [vmem:[%s202 + $0x8] sm:$0xf]
        %480 = vrot.lane.b32.xlu0 %v237, 16
        %v481 = vpop.permute.xlu0 %480
        %v482 = vrot.slane %v481, 4
        %vm483 = vcmask 130048
        %v484 = vsel %vm483, %v482, %v481
        %v487 = vmul.bf16 %v478, %v484
        %v488 = vmul.bf16 %v479, %v482
        %s489 = scalar_lea.vmem %s1, 12
        %v490 = vld [vmem:[%s489] sm:$0xf]
        %v493 = vunpack.c.l.b16 %v487
        %v494 = vunpack.c.h.b16 %v487
        %v495 = vunpack.c.l.b16 %v488
        %v496 = vpack.c.b16 %v493, %v493
        %v497 = vpack.c.b16 %v494, %v494
        %v498 = vpack.c.b16 %v495, %v495
        %499 = vrot.lane.b32.xlu0 %v496, 112
        %v500 = vpop.permute.xlu0 %499
        %501 = vrot.lane.b32.xlu0 %v497, 112
        %v502 = vpop.permute.xlu0 %501
        %503 = vrot.lane.b32.xlu0 %v498, 112
        %v504 = vpop.permute.xlu0 %503
        %vm505 = vcmask 916480
        %v506 = vsel %vm505, %v500, %v502
        %v507 = vsel %vm505, %v502, %v504
        %v509 = vsel %vm262, %v490, 0
        %v512 = vsel %vm266, %v506, 0
        %v515 = vsel %vm266, %v507, 0
        %517 = vmatprep.subr.bf16.mxu0 %v515
        %518 = vmatpush1.bf16.msra.mxu0 %v512
        %519 = vmatprep.subr.bf16.mxu0 0
        %520 = vmatpush1.bf16.msra.mxu0 0
        %521 = vmatprep.subr.bf16.mxu0 0
        %522 = vmatpush1.bf16.msra.mxu0 0
        %523 = vmatprep.subr.bf16.mxu0 0
        %524 = vmatpush1.bf16.msra.mxu0 0
        %525 = vmatprep.subr.bf16.mxu0 0
        %526 = vmatpush1.bf16.msra.mxu0 0
        %527 = vmatprep.subr.bf16.mxu0 0
        %528 = vmatpush1.bf16.msra.mxu0 0
        %529 = vmatprep.subr.bf16.mxu0 0
        %530 = vmatpush1.bf16.msra.mxu0 0
        %531 = vmatprep.subr.bf16.mxu0 0
        %532 = vmatpush1.bf16.msra.mxu0 0
        %533 = vmatprep.subr.bf16.mxu0 0
        %534 = vmatpush1.bf16.msra.mxu0 0
        %535 = vmatprep.subr.bf16.mxu0 0
        %536 = vmatpush1.bf16.msra.mxu0 0
        %537 = vmatprep.subr.bf16.mxu0 0
        %538 = vmatpush1.bf16.msra.mxu0 0
        %539 = vmatprep.subr.bf16.mxu0 0
        %540 = vmatpush1.bf16.msra.mxu0 0
        %541 = vmatprep.subr.bf16.mxu0 0
        %542 = vmatpush1.bf16.msra.mxu0 0
        %543 = vmatprep.subr.bf16.mxu0 0
        %544 = vmatpush1.bf16.msra.mxu0 0
        %545 = vmatprep.subr.bf16.mxu0 0
        %546 = vmatpush1.bf16.msra.mxu0 0
        %547 = vmatprep.subr.bf16.mxu0 0
        %548 = vmatpush1.bf16.msra.mxu0 0
        %549 = vmatprep.mubr.bf16.mxu0 0
        %550 = vmatmul.mubr.bf16.gmra.mrb[0].mxu0 %v509
        %v551 = vpop.f32.mrb[0].mxu0
        %v552 = vadd.f32 0.0, %v551
        %v553 = vpop.f32.mrb[0].mxu0
        %v554 = vadd.f32 0.0, %v553
        %v555 = vpop.f32.mrb[0].mxu0
        %v556 = vpop.f32.mrb[0].mxu0
        %557 = vdwg.mxu0
        %v558 = vadd.f32 %v476, %v552
        %v559 = vadd.f32 %v477, %v554
        %s560 = scalar_lea.vmem %s1, 16
        %v561 = vld [vmem:[%s560] sm:$0xf]
        %v564 = vunpack.c.l.b16 %v478
        %v565 = vunpack.c.h.b16 %v478
        %v566 = vunpack.c.l.b16 %v479
        %v567 = vpack.c.b16 %v564, %v564
        %v568 = vpack.c.b16 %v565, %v565
        %v569 = vpack.c.b16 %v566, %v566
        %570 = vrot.lane.b32.xlu0 %v567, 111
        %v571 = vpop.permute.xlu0 %570
        %572 = vrot.lane.b32.xlu0 %v568, 111
        %v573 = vpop.permute.xlu0 %572
        %574 = vrot.lane.b32.xlu0 %v569, 111
        %v575 = vpop.permute.xlu0 %574
        %vm576 = vcmask 908288
        %v577 = vsel %vm576, %v571, %v573
        %v578 = vsel %vm576, %v573, %v575
        %v580 = vsel %vm262, %v561, 0
        %v583 = vsel %vm266, %v577, 0
        %v586 = vsel %vm266, %v578, 0
        %588 = vmatprep.subr.bf16.mxu0 %v586
        %589 = vmatpush1.bf16.msra.mxu0 %v583
        %590 = vmatprep.subr.bf16.mxu0 0
        %591 = vmatpush1.bf16.msra.mxu0 0
        %592 = vmatprep.subr.bf16.mxu0 0
        %593 = vmatpush1.bf16.msra.mxu0 0
        %594 = vmatprep.subr.bf16.mxu0 0
        %595 = vmatpush1.bf16.msra.mxu0 0
        %596 = vmatprep.subr.bf16.mxu0 0
        %597 = vmatpush1.bf16.msra.mxu0 0
        %598 = vmatprep.subr.bf16.mxu0 0
        %599 = vmatpush1.bf16.msra.mxu0 0
        %600 = vmatprep.subr.bf16.mxu0 0
        %601 = vmatpush1.bf16.msra.mxu0 0
        %602 = vmatprep.subr.bf16.mxu0 0
        %603 = vmatpush1.bf16.msra.mxu0 0
        %604 = vmatprep.subr.bf16.mxu0 0
        %605 = vmatpush1.bf16.msra.mxu0 0
        %606 = vmatprep.subr.bf16.mxu0 0
        %607 = vmatpush1.bf16.msra.mxu0 0
        %608 = vmatprep.subr.bf16.mxu0 0
        %609 = vmatpush1.bf16.msra.mxu0 0
        %610 = vmatprep.subr.bf16.mxu0 0
        %611 = vmatpush1.bf16.msra.mxu0 0
        %612 = vmatprep.subr.bf16.mxu0 0
        %613 = vmatpush1.bf16.msra.mxu0 0
        %614 = vmatprep.subr.bf16.mxu0 0
        %615 = vmatpush1.bf16.msra.mxu0 0
        %616 = vmatprep.subr.bf16.mxu0 0
        %617 = vmatpush1.bf16.msra.mxu0 0
        %618 = vmatprep.subr.bf16.mxu0 0
        %619 = vmatpush1.bf16.msra.mxu0 0
        %620 = vmatprep.mubr.bf16.mxu0 0
        %621 = vmatmul.mubr.bf16.gmra.mrb[0].mxu0 %v580
        %v622 = vpop.f32.mrb[0].mxu0
        %v623 = vadd.f32 0.0, %v622
        %v624 = vpop.f32.mrb[0].mxu0
        %v625 = vadd.f32 0.0, %v624
        %v626 = vpop.f32.mrb[0].mxu0
        %v627 = vpop.f32.mrb[0].mxu0
        %628 = vdwg.mxu0
        %v629 = vadd.f32 %v558, %v623
        %v630 = vadd.f32 %v559, %v625
        %631 = vrot.lane.b32.xlu0 %v397, 18
        %v632 = vpop.permute.xlu0 %631
        %v633 = vrot.slane %v632, 4
        %vm634 = vcmask 146432
        %v635 = vsel %vm634, %v633, %v632
        %v638 = vmul.bf16 %v478, %v635
        %v639 = vmul.bf16 %v479, %v633
        %s640 = scalar_lea.vmem %s1, 20
        %v641 = vld [vmem:[%s640] sm:$0xf]
        %v644 = vunpack.c.l.b16 %v638
        %v645 = vunpack.c.h.b16 %v638
        %v646 = vunpack.c.l.b16 %v639
        %v647 = vpack.c.b16 %v644, %v644
        %v648 = vpack.c.b16 %v645, %v645
        %v649 = vpack.c.b16 %v646, %v646
        %650 = vrot.lane.b32.xlu0 %v647, 110
        %v651 = vpop.permute.xlu0 %650
        %652 = vrot.lane.b32.xlu0 %v648, 110
        %v653 = vpop.permute.xlu0 %652
        %654 = vrot.lane.b32.xlu0 %v649, 110
        %v655 = vpop.permute.xlu0 %654
        %vm656 = vcmask 900096
        %v657 = vsel %vm656, %v651, %v653
        %v658 = vsel %vm656, %v653, %v655
        %v660 = vsel %vm262, %v641, 0
        %v663 = vsel %vm266, %v657, 0
        %v666 = vsel %vm266, %v658, 0
        %668 = vmatprep.subr.bf16.mxu0 %v666
        %669 = vmatpush1.bf16.msra.mxu0 %v663
        %670 = vmatprep.subr.bf16.mxu0 0
        %671 = vmatpush1.bf16.msra.mxu0 0
        %672 = vmatprep.subr.bf16.mxu0 0
        %673 = vmatpush1.bf16.msra.mxu0 0
        %674 = vmatprep.subr.bf16.mxu0 0
        %675 = vmatpush1.bf16.msra.mxu0 0
        %676 = vmatprep.subr.bf16.mxu0 0
        %677 = vmatpush1.bf16.msra.mxu0 0
        %678 = vmatprep.subr.bf16.mxu0 0
        %679 = vmatpush1.bf16.msra.mxu0 0
        %680 = vmatprep.subr.bf16.mxu0 0
        %681 = vmatpush1.bf16.msra.mxu0 0
        %682 = vmatprep.subr.bf16.mxu0 0
        %683 = vmatpush1.bf16.msra.mxu0 0
        %684 = vmatprep.subr.bf16.mxu0 0
        %685 = vmatpush1.bf16.msra.mxu0 0
        %686 = vmatprep.subr.bf16.mxu0 0
        %687 = vmatpush1.bf16.msra.mxu0 0
        %688 = vmatprep.subr.bf16.mxu0 0
        %689 = vmatpush1.bf16.msra.mxu0 0
        %690 = vmatprep.subr.bf16.mxu0 0
        %691 = vmatpush1.bf16.msra.mxu0 0
        %692 = vmatprep.subr.bf16.mxu0 0
        %693 = vmatpush1.bf16.msra.mxu0 0
        %694 = vmatprep.subr.bf16.mxu0 0
        %695 = vmatpush1.bf16.msra.mxu0 0
        %696 = vmatprep.subr.bf16.mxu0 0
        %697 = vmatpush1.bf16.msra.mxu0 0
        %698 = vmatprep.subr.bf16.mxu0 0
        %699 = vmatpush1.bf16.msra.mxu0 0
        %700 = vmatprep.mubr.bf16.mxu0 0
        %701 = vmatmul.mubr.bf16.gmra.mrb[0].mxu0 %v660
        %v702 = vpop.f32.mrb[0].mxu0
        %v703 = vadd.f32 0.0, %v702
        %v704 = vpop.f32.mrb[0].mxu0
        %v705 = vadd.f32 0.0, %v704
        %v706 = vpop.f32.mrb[0].mxu0
        %v707 = vpop.f32.mrb[0].mxu0
        %708 = vdwg.mxu0
        %v709 = vadd.f32 %v629, %v703
        %v710 = vadd.f32 %v630, %v705
        %711 = vrot.lane.b32.xlu0 %v237, 32
        %v712 = vpop.permute.xlu0 %711
        %v713 = vrot.slane %v712, 4
        %vm714 = vcmask 261120
        %v715 = vsel %vm714, %v713, %v712
        %v718 = vmul.bf16 %v478, %v715
        %v719 = vmul.bf16 %v479, %v713
        %s720 = scalar_lea.vmem %s1, 24
        %v721 = vld [vmem:[%s720] sm:$0xf]
        %v724 = vunpack.c.l.b16 %v718
        %v725 = vunpack.c.h.b16 %v718
        %v726 = vunpack.c.l.b16 %v719
        %v727 = vpack.c.b16 %v724, %v724
        %v728 = vpack.c.b16 %v725, %v725
        %v729 = vpack.c.b16 %v726, %v726
        %730 = vrot.lane.b32.xlu0 %v727, 96
        %v731 = vpop.permute.xlu0 %730
        %732 = vrot.lane.b32.xlu0 %v728, 96
        %v733 = vpop.permute.xlu0 %732
        %734 = vrot.lane.b32.xlu0 %v729, 96
        %v735 = vpop.permute.xlu0 %734
        %vm736 = vcmask 785408
        %v737 = vsel %vm736, %v731, %v733
        %v738 = vsel %vm736, %v733, %v735
        %v740 = vsel %vm262, %v721, 0
        %v743 = vsel %vm266, %v737, 0
        %v746 = vsel %vm266, %v738, 0
        %748 = vmatprep.subr.bf16.mxu0 %v746
        %749 = vmatpush1.bf16.msra.mxu0 %v743
        %750 = vmatprep.subr.bf16.mxu0 0
        %751 = vmatpush1.bf16.msra.mxu0 0
        %752 = vmatprep.subr.bf16.mxu0 0
        %753 = vmatpush1.bf16.msra.mxu0 0
        %754 = vmatprep.subr.bf16.mxu0 0
        %755 = vmatpush1.bf16.msra.mxu0 0
        %756 = vmatprep.subr.bf16.mxu0 0
        %757 = vmatpush1.bf16.msra.mxu0 0
        %758 = vmatprep.subr.bf16.mxu0 0
        %759 = vmatpush1.bf16.msra.mxu0 0
        %760 = vmatprep.subr.bf16.mxu0 0
        %761 = vmatpush1.bf16.msra.mxu0 0
        %762 = vmatprep.subr.bf16.mxu0 0
        %763 = vmatpush1.bf16.msra.mxu0 0
        %764 = vmatprep.subr.bf16.mxu0 0
        %765 = vmatpush1.bf16.msra.mxu0 0
        %766 = vmatprep.subr.bf16.mxu0 0
        %767 = vmatpush1.bf16.msra.mxu0 0
        %768 = vmatprep.subr.bf16.mxu0 0
        %769 = vmatpush1.bf16.msra.mxu0 0
        %770 = vmatprep.subr.bf16.mxu0 0
        %771 = vmatpush1.bf16.msra.mxu0 0
        %772 = vmatprep.subr.bf16.mxu0 0
        %773 = vmatpush1.bf16.msra.mxu0 0
        %774 = vmatprep.subr.bf16.mxu0 0
        %775 = vmatpush1.bf16.msra.mxu0 0
        %776 = vmatprep.subr.bf16.mxu0 0
        %777 = vmatpush1.bf16.msra.mxu0 0
        %778 = vmatprep.subr.bf16.mxu0 0
        %779 = vmatpush1.bf16.msra.mxu0 0
        %780 = vmatprep.mubr.bf16.mxu0 0
        %781 = vmatmul.mubr.bf16.gmra.mrb[0].mxu0 %v740
        %v782 = vpop.f32.mrb[0].mxu0
        %v783 = vadd.f32 0.0, %v782
        %v784 = vpop.f32.mrb[0].mxu0
        %v785 = vadd.f32 0.0, %v784
        %v786 = vpop.f32.mrb[0].mxu0
        %v787 = vpop.f32.mrb[0].mxu0
        %788 = vdwg.mxu0
        %v789 = vadd.f32 %v709, %v783
        %v790 = vadd.f32 %v710, %v785
        %s791 = scalar_lea.vmem %s1, 28
        %v792 = vld [vmem:[%s791] sm:$0xf]
        %793 = vrot.lane.b32.xlu0 %v567, 95
        %v794 = vpop.permute.xlu0 %793
        %795 = vrot.lane.b32.xlu0 %v568, 95
        %v796 = vpop.permute.xlu0 %795
        %797 = vrot.lane.b32.xlu0 %v569, 95
        %v798 = vpop.permute.xlu0 %797
        %vm799 = vcmask 777216
        %v800 = vsel %vm799, %v794, %v796
        %v801 = vsel %vm799, %v796, %v798
        %v803 = vsel %vm262, %v792, 0
        %v806 = vsel %vm266, %v800, 0
        %v809 = vsel %vm266, %v801, 0
        %811 = vmatprep.subr.bf16.mxu0 %v809
        %812 = vmatpush1.bf16.msra.mxu0 %v806
        %813 = vmatprep.subr.bf16.mxu0 0
        %814 = vmatpush1.bf16.msra.mxu0 0
        %815 = vmatprep.subr.bf16.mxu0 0
        %816 = vmatpush1.bf16.msra.mxu0 0
        %817 = vmatprep.subr.bf16.mxu0 0
        %818 = vmatpush1.bf16.msra.mxu0 0
        %819 = vmatprep.subr.bf16.mxu0 0
        %820 = vmatpush1.bf16.msra.mxu0 0
        %821 = vmatprep.subr.bf16.mxu0 0
        %822 = vmatpush1.bf16.msra.mxu0 0
        %823 = vmatprep.subr.bf16.mxu0 0
        %824 = vmatpush1.bf16.msra.mxu0 0
        %825 = vmatprep.subr.bf16.mxu0 0
        %826 = vmatpush1.bf16.msra.mxu0 0
        %827 = vmatprep.subr.bf16.mxu0 0
        %828 = vmatpush1.bf16.msra.mxu0 0
        %829 = vmatprep.subr.bf16.mxu0 0
        %830 = vmatpush1.bf16.msra.mxu0 0
        %831 = vmatprep.subr.bf16.mxu0 0
        %832 = vmatpush1.bf16.msra.mxu0 0
        %833 = vmatprep.subr.bf16.mxu0 0
        %834 = vmatpush1.bf16.msra.mxu0 0
        %835 = vmatprep.subr.bf16.mxu0 0
        %836 = vmatpush1.bf16.msra.mxu0 0
        %837 = vmatprep.subr.bf16.mxu0 0
        %838 = vmatpush1.bf16.msra.mxu0 0
        %839 = vmatprep.subr.bf16.mxu0 0
        %840 = vmatpush1.bf16.msra.mxu0 0
        %841 = vmatprep.subr.bf16.mxu0 0
        %842 = vmatpush1.bf16.msra.mxu0 0
        %843 = vmatprep.mubr.bf16.mxu0 0
        %844 = vmatmul.mubr.bf16.gmra.mrb[0].mxu0 %v803
        %v845 = vpop.f32.mrb[0].mxu0
        %v846 = vadd.f32 0.0, %v845
        %v847 = vpop.f32.mrb[0].mxu0
        %v848 = vadd.f32 0.0, %v847
        %v849 = vpop.f32.mrb[0].mxu0
        %v850 = vpop.f32.mrb[0].mxu0
        %851 = vdwg.mxu0
        %v852 = vadd.f32 %v789, %v846
        %v853 = vadd.f32 %v790, %v848
        %854 = vrot.lane.b32.xlu0 %v397, 34
        %v855 = vpop.permute.xlu0 %854
        %v856 = vrot.slane %v855, 4
        %vm857 = vcmask 277504
        %v858 = vsel %vm857, %v856, %v855
        %v861 = vmul.bf16 %v478, %v858
        %v862 = vmul.bf16 %v479, %v856
        %s863 = scalar_lea.vmem %s1, 32
        %v864 = vld [vmem:[%s863] sm:$0xf]
        %v867 = vunpack.c.l.b16 %v861
        %v868 = vunpack.c.h.b16 %v861
        %v869 = vunpack.c.l.b16 %v862
        %v870 = vpack.c.b16 %v867, %v867
        %v871 = vpack.c.b16 %v868, %v868
        %v872 = vpack.c.b16 %v869, %v869
        %873 = vrot.lane.b32.xlu0 %v870, 94
        %v874 = vpop.permute.xlu0 %873
        %875 = vrot.lane.b32.xlu0 %v871, 94
        %v876 = vpop.permute.xlu0 %875
        %877 = vrot.lane.b32.xlu0 %v872, 94
        %v878 = vpop.permute.xlu0 %877
        %vm879 = vcmask 769024
        %v880 = vsel %vm879, %v874, %v876
        %v881 = vsel %vm879, %v876, %v878
        %v883 = vsel %vm262, %v864, 0
        %v886 = vsel %vm266, %v880, 0
        %v889 = vsel %vm266, %v881, 0
        %891 = vmatprep.subr.bf16.mxu0 %v889
        %892 = vmatpush1.bf16.msra.mxu0 %v886
        %893 = vmatprep.subr.bf16.mxu0 0
        %894 = vmatpush1.bf16.msra.mxu0 0
        %895 = vmatprep.subr.bf16.mxu0 0
        %896 = vmatpush1.bf16.msra.mxu0 0
        %897 = vmatprep.subr.bf16.mxu0 0
        %898 = vmatpush1.bf16.msra.mxu0 0
        %899 = vmatprep.subr.bf16.mxu0 0
        %900 = vmatpush1.bf16.msra.mxu0 0
        %901 = vmatprep.subr.bf16.mxu0 0
        %902 = vmatpush1.bf16.msra.mxu0 0
        %903 = vmatprep.subr.bf16.mxu0 0
        %904 = vmatpush1.bf16.msra.mxu0 0
        %905 = vmatprep.subr.bf16.mxu0 0
        %906 = vmatpush1.bf16.msra.mxu0 0
        %907 = vmatprep.subr.bf16.mxu0 0
        %908 = vmatpush1.bf16.msra.mxu0 0
        %909 = vmatprep.subr.bf16.mxu0 0
        %910 = vmatpush1.bf16.msra.mxu0 0
        %911 = vmatprep.subr.bf16.mxu0 0
        %912 = vmatpush1.bf16.msra.mxu0 0
        %913 = vmatprep.subr.bf16.mxu0 0
        %914 = vmatpush1.bf16.msra.mxu0 0
        %915 = vmatprep.subr.bf16.mxu0 0
        %916 = vmatpush1.bf16.msra.mxu0 0
        %917 = vmatprep.subr.bf16.mxu0 0
        %918 = vmatpush1.bf16.msra.mxu0 0
        %919 = vmatprep.subr.bf16.mxu0 0
        %920 = vmatpush1.bf16.msra.mxu0 0
        %921 = vmatprep.subr.bf16.mxu0 0
        %922 = vmatpush1.bf16.msra.mxu0 0
        %923 = vmatprep.mubr.bf16.mxu0 0
        %924 = vmatmul.mubr.bf16.gmra.mrb[0].mxu0 %v883
        %v925 = vpop.f32.mrb[0].mxu0
        %v926 = vadd.f32 0.0, %v925
        %v927 = vpop.f32.mrb[0].mxu0
        %v928 = vadd.f32 0.0, %v927
        %v929 = vpop.f32.mrb[0].mxu0
        %v930 = vpop.f32.mrb[0].mxu0
        %931 = vdwg.mxu0
        %v932 = vadd.f32 %v852, %v926
        %v933 = vadd.f32 %v853, %v928
        %v934 = vpack.c.bf16 %v932, %v932
        %v935 = vpack.c.bf16 %v933, %v933
        %v938 = vunpack.c.l.b16 %v934
        %v939 = vunpack.c.l.b16 %v935
        %v940 = vpack.c.b16 %v939, %v938
        %942 = vst [vmem:[%s191] sm:$0xff] %v940
        %v943 = vadd.f32 %v932, %v933
        %944 = vadd.xlane.f32.xlu0 %v943
        %v945 = vpop.xlane.xlu0 %944
        %vm946 = vcmask 7168
        %947 = vst.msk [vmem:[%s206] sm:$0xff] %vm946, %v945
        %v948 = vmul.f32 %v932, %v932
        %v949 = vmul.f32 %v933, %v933
        %v950 = vadd.f32 %v948, %v949
        %951 = vadd.xlane.f32.xlu0 %v950
        %v952 = vpop.xlane.xlu0 %951
        %vm953 = vcmask 15368
        %954 = vst.msk [vmem:[%s206] sm:$0xff] %vm953, %v952
        %s955 = sand.u32 %s95, 1
        %s956 = scalar_lea.sflag [#allocation3], %s955
        %s957 = sand.u32 %s95, 1
        %s958 = smul.addr %s957, 8
        %s959 = scalar_lea.vmem [#allocation2], %s958
        %p960 = scmp.lt.s32.totalorder %s19, 1
        %s961 = scalar_select %p960, %s19, 1
        %s962 = smul.addr %s961, 8
        %s963 = scalar_lea.vmem %s4, %s962
        // Predicated region
        $region33: #{tpu_custom_call.1} parent=31 // pred_check
          %p964 = pneg %p105
        $region34: #{tpu_custom_call.1} parent=31 // pred_check_branch
          %966 = sbr.rel (%p964) target = $region36
        $region35: #{tpu_custom_call.1} parent=31 // pred_region
          %s968 = ssub.s32 128, 128
          %969 = vsyncadd %s956, %s968
          %s970 = smul.addr %s19, 2
          %s971 = smul.addr %s970, 64
          %s972 = scalar_lea.hbm %s3, %s971
          %s974 = sshll.u32 %s959, 4
          %s975 = int_to_ptr.vmem [resolvable:$true] %s974
          %977 = dma.vmem_to_hbm [thread:$0]  %s975, 128, %s972, %s956
        $region36: #{tpu_custom_call.1} parent=31 // pred_fallthru
          _
        // Predicated region
        $region37: #{tpu_custom_call.1} parent=31 // pred_check
          %p978 = pneg %p131
        $region38: #{tpu_custom_call.1} parent=31 // pred_check_branch
          %980 = sbr.rel (%p978) target = $region40
        $region39: #{tpu_custom_call.1} parent=31 // pred_region
          _
        $region40: #{tpu_custom_call.1} parent=31 // pred_fallthru
          _
      $region32: #{tpu_custom_call.1} parent=5 // pred_fallthru
        _
      %p981 = scmp.le.s32.totalorder 2, %s14
      // Predicated region
      $region41: #{tpu_custom_call.1} parent=5 // pred_check
        %p982 = pneg %p981
      $region42: #{tpu_custom_call.1} parent=5 // pred_check_branch
        %984 = sbr.rel (%p982) target = $region44
      $region43: #{tpu_custom_call.1} parent=5 // pred_region
        %s985 = ssub.s32 %s14, 2
        // Predicated region
        $region45: #{tpu_custom_call.1} parent=43 // pred_check
          %p986 = pneg %p111
        $region46: #{tpu_custom_call.1} parent=43 // pred_check_branch
          %988 = sbr.rel (%p986) target = $region48
        $region47: #{tpu_custom_call.1} parent=43 // pred_region
          %s989 = sand.u32 %s96, 1
          %s990 = scalar_lea.sflag [#allocation3], %s989
          %s991 = sand.u32 %s96, 1
          %s992 = smul.addr %s991, 8
          %s993 = scalar_lea.vmem [#allocation2], %s992
          %994 = dma.done %s990, 128
        $region48: #{tpu_custom_call.1} parent=43 // pred_fallthru
          _
        // Predicated region
        $region49: #{tpu_custom_call.1} parent=43 // pred_check
          %p995 = pneg %p137
        $region50: #{tpu_custom_call.1} parent=43 // pred_check_branch
          %997 = sbr.rel (%p995) target = $region52
        $region51: #{tpu_custom_call.1} parent=43 // pred_region
          %p998 = scmp.lt.s32.totalorder %s20, 1
          %s999 = scalar_select %p998, %s20, 1
          %s1000 = smul.addr %s999, 8
          %s1001 = scalar_lea.vmem %s4, %s1000
        $region52: #{tpu_custom_call.1} parent=43 // pred_fallthru
          _
      $region44: #{tpu_custom_call.1} parent=5 // pred_fallthru
        _
    $region6: #{tpu_custom_call.1} parent=1 // loop_footer
      %s18 = sadd.s32 1, %s14
    $region7: #{tpu_custom_call.1} parent=1 // loop_footer_branch
      %13 = sbr.rel target = $region3
    $region8: #{tpu_custom_call.1} parent=1 // loop_exit
      _
    %1002 = vsyncpa [#allocation3], 1
    %s1003 = scalar_lea.sflag [#allocation3], 1
    %1004 = vsyncpa %s1003, 1

</llo_original>
